<compile_context>
chip_gen: v6e
topology: v6e:2x2x1
jax: 0.10.0
libtpu: 0.0.40
codegen_flags: <defaults>
</compile_context>

<pallas_src>
import functools

import jax
import jax.numpy as jnp
from jax import lax
from jax.experimental import pallas as pl
from jax.experimental.pallas import tpu as pltpu


def _round_up(n, m):
    return ((n + m - 1) // m) * m


def _mlp_skip_kernel(depth, n_sub, sub, bf16_epilogue,
                     x_ref,       # (TB, D_in)                 bf16
                     w_in_ref,    # (D_in, W)                  bf16
                     v_in_ref,    # (3, W) [bias, scale, shift] f32
                     w_blk_ref,   # (nblk, W, W)               bf16
                     v_blk_ref,   # (nblk, 3, W)               f32
                     w_out_ref,   # (W, D_out_pad)             bf16
                     b_out_ref,   # (1, D_out_pad)             f32
                     o_ref):      # (TB, D_out_pad)            f32 | bf16
    def sub_chunk(c, carry):
        r = pl.multiple_of(c * sub, sub)
        x = x_ref[pl.ds(r, sub), :]

        # Input block: Linear -> ReLU -> folded BatchNorm1d (f32 epilogue).
        h = jnp.dot(x, w_in_ref[...], preferred_element_type=jnp.float32)
        h = jnp.maximum(h + v_in_ref[0:1, :], 0.0)
        h = h * v_in_ref[1:2, :] + v_in_ref[2:3, :]

        # (depth - 1) residual MLPBlocks: h = h + BN(ReLU(Linear(h))).
        # Static unroll: depth is a small compile-time constant; weights are
        # VMEM-resident across the whole grid.
        for i in range(depth - 1):
            z = jnp.dot(h.astype(jnp.bfloat16), w_blk_ref[i],
                        preferred_element_type=jnp.float32)
            if bf16_epilogue:
                # v6e/v7x: bf16 VALU -> packed epilogue, f32 residual accum.
                zb = z.astype(jnp.bfloat16)
                zb = jnp.maximum(zb + v_blk_ref[i, 0:1, :].astype(jnp.bfloat16),
                                 0.0)
                zb = (zb * v_blk_ref[i, 1:2, :].astype(jnp.bfloat16)
                      + v_blk_ref[i, 2:3, :].astype(jnp.bfloat16))
                h = h + zb.astype(jnp.float32)
            else:
                # v5e: f32 epilogue (no bf16 VALU; hides under 128x128 MXU).
                z = jnp.maximum(z + v_blk_ref[i, 0:1, :], 0.0)
                z = z * v_blk_ref[i, 1:2, :] + v_blk_ref[i, 2:3, :]
                h = h + z

        # Output Linear (lane-dense padded N).
        y = jnp.dot(h.astype(jnp.bfloat16), w_out_ref[...],
                    preferred_element_type=jnp.float32) + b_out_ref[...]
        o_ref[pl.ds(r, sub), :] = y.astype(o_ref.dtype)
        return carry

    # Unrolled, vreg-bounded sub-chunk loop over the (TB, ...) tile.
    lax.fori_loop(0, n_sub, sub_chunk, 0, unroll=True)


def prepare_params(params, *, eps=1e-5):
    """One-time (outside the hot path): transpose weights, fold BN, pad, cast."""
    width, d_in = params["w_in"].shape
    d_out = params["w_out"].shape[0]
    d_out_pad = _round_up(d_out, 128)

    def fold_bn(gamma, beta, mean, var):
        s = gamma / jnp.sqrt(var + eps)
        t = beta - mean * s
        return s, t

    # Input layer: transposed, bf16, K left un-padded (full-extent block dim).
    w_in = params["w_in"].T.astype(jnp.bfloat16)
    s_in, t_in = fold_bn(params["bn_in_gamma"], params["bn_in_beta"],
                         params["bn_in_mean"], params["bn_in_var"])
    v_in = jnp.stack([params["b_in"], s_in, t_in], axis=0).astype(jnp.float32)

    # Residual blocks: transposed per block, bf16; packed (bias, scale, shift).
    nblk = params["w_blk"].shape[0]
    if nblk == 0:  # depth == 1: dummy (never read by the kernel's static loop)
        w_blk = jnp.zeros((1, width, width), jnp.bfloat16)
        v_blk = jnp.zeros((1, 3, width), jnp.float32)
    else:
        w_blk = jnp.transpose(params["w_blk"], (0, 2, 1)).astype(jnp.bfloat16)
        s_blk, t_blk = fold_bn(params["bn_blk_gamma"], params["bn_blk_beta"],
                               params["bn_blk_mean"], params["bn_blk_var"])
        v_blk = jnp.stack([params["b_blk"], s_blk, t_blk],
                          axis=1).astype(jnp.float32)

    # Output layer: transposed + N zero-padded (lane-dense stores).
    w_out = jnp.zeros((width, d_out_pad), jnp.bfloat16)
    w_out = w_out.at[:, :d_out].set(params["w_out"].T.astype(jnp.bfloat16))
    b_out = jnp.zeros((1, d_out_pad), jnp.float32)
    b_out = b_out.at[0, :d_out].set(params["b_out"].astype(jnp.float32))

    return {"w_in": w_in, "v_in": v_in, "w_blk": w_blk, "v_blk": v_blk,
            "w_out": w_out, "b_out": b_out}


def mlp_skip_forward(x, kp, *, input_dim, output_dim, depth,
                     flatten_image=True, tb=512, bf16_out=None):
    if flatten_image:
        x = x.reshape(-1, input_dim)  # == torch x.view(-1, input_dim)
    B = x.shape[0]

    d_in, width = kp["w_in"].shape
    d_out_pad = kp["w_out"].shape[1]
    n_blk = kp["w_blk"].shape[0]

    # ---- hardware-aware knobs ----------------------------------------------
    try:
        vmem_cap = int(pltpu.get_tpu_info().vmem_capacity_bytes)
    except Exception:
        vmem_cap = 128 << 20
    kind = ""
    try:
        kind = jax.devices()[0].device_kind.lower()
    except Exception:
        pass
    is_v5e = any(s in kind for s in ("v5e", "v5 lite", "v5lite"))
    bf16_epilogue = not is_v5e        # v5e: keep f32 epilogue (no bf16 VALU)
    if bf16_out is None:
        bf16_out = is_v5e             # v5e is mem-bound: halve output writes
    out_dtype = jnp.bfloat16 if bf16_out else jnp.float32
    out_bytes = 2 if bf16_out else 4

    # ---- batch tiling --------------------------------------------------------
    b16 = _round_up(B, 16)            # native bf16 sublane packing
    tb_eff = min(tb, b16)
    if tb_eff == b16 and b16 >= 32:
        # Single tile would cover the whole batch -> split so the grid has
        # >=2 steps and a 2-TC chip (v7x) shards the batch (no-op on v5e/v6e).
        tb_eff = _round_up((b16 + 1) // 2, 16)
    if tb_eff > 128:
        tb_eff = _round_up(tb_eff, 128)   # vreg-safe 128-row sub-chunks
        sub = 128
    else:
        sub = tb_eff
    n_sub = tb_eff // sub
    b_pad = _round_up(B, tb_eff)
    grid = (b_pad // tb_eff,)

    # bf16 cast (+ batch-remainder pad only). K stays un-padded -> no extra
    # full-activation zero-pad pass through HBM before the kernel.
    x_bf = x.astype(jnp.bfloat16)
    if b_pad > B:
        x_bf = jnp.pad(x_bf, ((0, b_pad - B), (0, 0)))

    flops = 2 * b_pad * (d_in * width + n_blk * width * width
                         + width * d_out_pad)
    bytes_accessed = (x_bf.size * 2 + b_pad * d_out_pad * out_bytes
                      + (kp["w_in"].size + kp["w_blk"].size + kp["w_out"].size) * 2
                      + (kp["v_in"].size + kp["v_blk"].size + kp["b_out"].size) * 4)

    # Params are single-buffered (Buffered(1)); activations double-buffered.
    param_vmem = ((kp["w_in"].size + kp["w_blk"].size + kp["w_out"].size) * 2
                  + (kp["v_in"].size + kp["v_blk"].size + kp["b_out"].size) * 4)
    act_vmem = 2 * (tb_eff * d_in * 2 + tb_eff * d_out_pad * out_bytes)
    vmem_limit = int(min(max(param_vmem + act_vmem + (8 << 20), 16 << 20),
                         int(0.7 * vmem_cap)))

    kernel = functools.partial(_mlp_skip_kernel, depth, n_sub, sub,
                               bf16_epilogue)
    resident = dict(pipeline_mode=pl.Buffered(1))   # grid-invariant params

    out = pl.pallas_call(
        kernel,
        out_shape=jax.ShapeDtypeStruct((b_pad, d_out_pad), out_dtype),
        grid=grid,
        in_specs=[
            pl.BlockSpec((tb_eff, d_in), lambda i: (i, 0)),              # x (tiled)
            pl.BlockSpec((d_in, width), lambda i: (0, 0), **resident),   # w_in
            pl.BlockSpec((3, width), lambda i: (0, 0), **resident),      # v_in
            pl.BlockSpec((n_blk, width, width),
                         lambda i: (0, 0, 0), **resident),               # w_blk
            pl.BlockSpec((n_blk, 3, width),
                         lambda i: (0, 0, 0), **resident),               # v_blk
            pl.BlockSpec((width, d_out_pad), lambda i: (0, 0), **resident),  # w_out
            pl.BlockSpec((1, d_out_pad), lambda i: (0, 0), **resident),      # b_out
        ],
        out_specs=pl.BlockSpec((tb_eff, d_out_pad), lambda i: (i, 0)),
        compiler_params=pltpu.CompilerParams(
            dimension_semantics=("parallel",),
            vmem_limit_bytes=vmem_limit),
        cost_estimate=pl.CostEstimate(flops=int(flops), transcendentals=0,
                                      bytes_accessed=int(bytes_accessed)),
    )(x_bf, kp["w_in"], kp["v_in"], kp["w_blk"], kp["v_blk"],
      kp["w_out"], kp["b_out"])

    # Slice off batch/output padding; present f32 to downstream regardless of
    # the (possibly bf16) kernel store dtype.
    return out[:B, :output_dim].astype(jnp.float32)


def _reference_forward(x, params, *, input_dim, depth, flatten_image=True):
    """Pure-JAX f32 reference mirroring the PyTorch module (eval-mode BN)."""
    if flatten_image:
        x = x.reshape(-1, input_dim)
    eps = 1e-5

    def bn(h, g, b, m, v):
        return (h - m) / jnp.sqrt(v + eps) * g + b

    h = x @ params["w_in"].T + params["b_in"]
    h = jax.nn.relu(h)
    h = bn(h, params["bn_in_gamma"], params["bn_in_beta"],
           params["bn_in_mean"], params["bn_in_var"])
    for i in range(depth - 1):
        z = h @ params["w_blk"][i].T + params["b_blk"][i]
        z = jax.nn.relu(z)
        z = bn(z, params["bn_blk_gamma"][i], params["bn_blk_beta"][i],
               params["bn_blk_mean"][i], params["bn_blk_var"][i])
        h = h + z
    return h @ params["w_out"].T + params["b_out"]


def init_params(key, input_dim, width, depth, output_dim):
    ks = jax.random.split(key, 14)
    nblk = depth - 1

    def lin(k, fan_in, shape):
        bound = 1.0 / jnp.sqrt(fan_in)
        return jax.random.uniform(k, shape, jnp.float32, -bound, bound)

    return {
        "w_in": lin(ks[0], input_dim, (width, input_dim)),
        "b_in": lin(ks[1], input_dim, (width,)),
        "bn_in_gamma": 1.0 + 0.1 * jax.random.normal(ks[2], (width,), jnp.float32),
        "bn_in_beta": 0.1 * jax.random.normal(ks[3], (width,), jnp.float32),
        "bn_in_mean": 0.05 * jax.random.normal(ks[4], (width,), jnp.float32),
        "bn_in_var": jnp.abs(1.0 + 0.1 * jax.random.normal(ks[5], (width,), jnp.float32)),
        "w_blk": lin(ks[6], width, (nblk, width, width)),
        "b_blk": lin(ks[7], width, (nblk, width)),
        "bn_blk_gamma": 1.0 + 0.1 * jax.random.normal(ks[8], (nblk, width), jnp.float32),
        "bn_blk_beta": 0.1 * jax.random.normal(ks[9], (nblk, width), jnp.float32),
        "bn_blk_mean": 0.05 * jax.random.normal(ks[10], (nblk, width), jnp.float32),
        "bn_blk_var": jnp.abs(1.0 + 0.1 * jax.random.normal(ks[11], (nblk, width), jnp.float32)),
        "w_out": lin(ks[12], width, (output_dim, width)),
        "b_out": lin(ks[13], width, (output_dim,)),
    }


if __name__ == "__main__":
    # Small, module-consistent shapes: NCHW image (B=64, C=1, H=8, W=8),
    # flatten_image=True -> input_dim=64; width=128; depth=3; output_dim=16.
    # tb=32 here is TEST-ONLY so the batch grid has >1 step at this tiny size;
    # production default is tb=512.
    B, C, H, Wimg = 64, 1, 8, 8
    input_dim = C * H * Wimg
    width, depth, output_dim = 128, 3, 16

    key = jax.random.PRNGKey(0)
    kx, kparam = jax.random.split(key)
    x = jax.random.normal(kx, (B, C, H, Wimg), jnp.float32)
    params = init_params(kparam, input_dim, width, depth, output_dim)

    # One-time param prep (transpose / fold BN / pad / bf16) outside the hot path.
    kp = prepare_params(params)

    fwd = jax.jit(functools.partial(
        mlp_skip_forward, input_dim=input_dim, output_dim=output_dim,
        depth=depth, flatten_image=True, tb=32))

    out = jax.block_until_ready(fwd(x, kp))

    ref = _reference_forward(x, params, input_dim=input_dim, depth=depth,
                             flatten_image=True)
    assert out.shape == (B, output_dim)
    # bf16 matmul operands (and generation-gated bf16 epilogue) with f32
    # accumulation -> looser tolerance vs the pure-f32 reference.
    # TODO(synk): re-validate tolerance for deep/production configs where bf16
    #             quantization compounds further through the residual stream.
    assert jnp.allclose(out, ref, atol=5e-2, rtol=5e-2), "mismatch vs. reference"

    print("KERNEL_OK")
</pallas_src>

<mosaic_0001>
module attributes {stable_mosaic.version = 11 : i64} {
  func.func @_mlp_skip_kernel(%arg0: i32, %arg1: memref<32x64xbf16, #tpu.memory_space<vmem>>, %arg2: memref<64x128xbf16, #tpu.memory_space<vmem>>, %arg3: memref<3x128xf32, #tpu.memory_space<vmem>>, %arg4: memref<2x128x128xbf16, #tpu.memory_space<vmem>>, %arg5: memref<2x3x128xf32, #tpu.memory_space<vmem>>, %arg6: memref<128x128xbf16, #tpu.memory_space<vmem>>, %arg7: memref<1x128xf32, #tpu.memory_space<vmem>>, %arg8: memref<32x128xf32, #tpu.memory_space<vmem>>) attributes {dimension_semantics = [#tpu.dimension_semantics<parallel>], iteration_bounds = array<i64: 2>, scalar_prefetch = 0 : i64, scratch_operands = 0 : i64, tpu.core_type = #tpu.core_type<tc>, window_params = [{transform_indices = @transform_0, window_bounds = array<i64: 32, 64>}, {pipeline_mode = #tpu.pipeline_mode<synchronous>, transform_indices = @transform_1, window_bounds = array<i64: 64, 128>}, {pipeline_mode = #tpu.pipeline_mode<synchronous>, transform_indices = @transform_2, window_bounds = array<i64: 3, 128>}, {pipeline_mode = #tpu.pipeline_mode<synchronous>, transform_indices = @transform_3, window_bounds = array<i64: 2, 128, 128>}, {pipeline_mode = #tpu.pipeline_mode<synchronous>, transform_indices = @transform_4, window_bounds = array<i64: 2, 3, 128>}, {pipeline_mode = #tpu.pipeline_mode<synchronous>, transform_indices = @transform_5, window_bounds = array<i64: 128, 128>}, {pipeline_mode = #tpu.pipeline_mode<synchronous>, transform_indices = @transform_6, window_bounds = array<i64: 1, 128>}, {transform_indices = @transform_7, window_bounds = array<i64: 32, 128>}]} {
    %c0_i32 = arith.constant 0 : i32
    %c32_i32 = arith.constant 32 : i32
    %0 = arith.muli %c0_i32, %c32_i32 : i32
    %1 = tpu.assume_multiple %0, 32 : i32
    %2 = arith.index_cast %1 : i32 to index
    %c0 = arith.constant 0 : index
    %3 = vector.load %arg1[%2, %c0] : memref<32x64xbf16, #tpu.memory_space<vmem>>, vector<32x64xbf16>
    %c0_0 = arith.constant 0 : index
    %c0_1 = arith.constant 0 : index
    %4 = vector.load %arg2[%c0_0, %c0_1] : memref<64x128xbf16, #tpu.memory_space<vmem>>, vector<64x128xbf16>
    %cst = arith.constant dense<0.000000e+00> : vector<32x128xf32>
    %5 = tpu.matmul %3, %4, %cst {dimension_numbers = #tpu.dot_dimension_numbers<[1], [0], [0], [1], [0, 0, 1, 1], [], []>} : vector<32x64xbf16>, vector<64x128xbf16>, vector<32x128xf32> -> vector<32x128xf32>
    %c0_2 = arith.constant 0 : index
    %c0_3 = arith.constant 0 : index
    %6 = vector.load %arg3[%c0_2, %c0_3] : memref<3x128xf32, #tpu.memory_space<vmem>>, vector<1x128xf32>
    %7 = vector.broadcast %6 : vector<1x128xf32> to vector<32x128xf32>
    %8 = arith.addf %5, %7 : vector<32x128xf32>
    %cst_4 = arith.constant 0.000000e+00 : f32
    %9 = vector.broadcast %cst_4 : f32 to vector<32x128xf32>
    %10 = arith.maximumf %8, %9 : vector<32x128xf32>
    %c1 = arith.constant 1 : index
    %c0_5 = arith.constant 0 : index
    %11 = vector.load %arg3[%c1, %c0_5] : memref<3x128xf32, #tpu.memory_space<vmem>>, vector<1x128xf32>
    %12 = vector.broadcast %11 : vector<1x128xf32> to vector<32x128xf32>
    %13 = arith.mulf %10, %12 : vector<32x128xf32>
    %c2 = arith.constant 2 : index
    %c0_6 = arith.constant 0 : index
    %14 = vector.load %arg3[%c2, %c0_6] : memref<3x128xf32, #tpu.memory_space<vmem>>, vector<1x128xf32>
    %15 = vector.broadcast %14 : vector<1x128xf32> to vector<32x128xf32>
    %16 = arith.addf %13, %15 : vector<32x128xf32>
    %17 = arith.truncf %16 : vector<32x128xf32> to vector<32x128xbf16>
    %c0_7 = arith.constant 0 : index
    %c0_8 = arith.constant 0 : index
    %c0_9 = arith.constant 0 : index
    %18 = vector.load %arg4[%c0_7, %c0_8, %c0_9] : memref<2x128x128xbf16, #tpu.memory_space<vmem>>, vector<1x128x128xbf16>
    %19 = vector.shape_cast %18 : vector<1x128x128xbf16> to vector<128x128xbf16>
    %cst_10 = arith.constant dense<0.000000e+00> : vector<32x128xf32>
    %20 = tpu.matmul %17, %19, %cst_10 {dimension_numbers = #tpu.dot_dimension_numbers<[1], [0], [0], [1], [0, 0, 1, 1], [], []>} : vector<32x128xbf16>, vector<128x128xbf16>, vector<32x128xf32> -> vector<32x128xf32>
    %21 = arith.truncf %20 : vector<32x128xf32> to vector<32x128xbf16>
    %c0_11 = arith.constant 0 : index
    %c0_12 = arith.constant 0 : index
    %c0_13 = arith.constant 0 : index
    %22 = vector.load %arg5[%c0_11, %c0_12, %c0_13] : memref<2x3x128xf32, #tpu.memory_space<vmem>>, vector<1x1x128xf32>
    %23 = vector.shape_cast %22 : vector<1x1x128xf32> to vector<1x128xf32>
    %24 = arith.truncf %23 : vector<1x128xf32> to vector<1x128xbf16>
    %25 = vector.broadcast %24 : vector<1x128xbf16> to vector<32x128xbf16>
    %26 = arith.addf %21, %25 : vector<32x128xbf16>
    %cst_14 = arith.constant 0.000000e+00 : bf16
    %27 = vector.broadcast %cst_14 : bf16 to vector<32x128xbf16>
    %28 = arith.maximumf %26, %27 : vector<32x128xbf16>
    %c0_15 = arith.constant 0 : index
    %c1_16 = arith.constant 1 : index
    %c0_17 = arith.constant 0 : index
    %29 = vector.load %arg5[%c0_15, %c1_16, %c0_17] : memref<2x3x128xf32, #tpu.memory_space<vmem>>, vector<1x1x128xf32>
    %30 = vector.shape_cast %29 : vector<1x1x128xf32> to vector<1x128xf32>
    %31 = arith.truncf %30 : vector<1x128xf32> to vector<1x128xbf16>
    %32 = vector.broadcast %31 : vector<1x128xbf16> to vector<32x128xbf16>
    %33 = arith.mulf %28, %32 : vector<32x128xbf16>
    %c0_18 = arith.constant 0 : index
    %c2_19 = arith.constant 2 : index
    %c0_20 = arith.constant 0 : index
    %34 = vector.load %arg5[%c0_18, %c2_19, %c0_20] : memref<2x3x128xf32, #tpu.memory_space<vmem>>, vector<1x1x128xf32>
    %35 = vector.shape_cast %34 : vector<1x1x128xf32> to vector<1x128xf32>
    %36 = arith.truncf %35 : vector<1x128xf32> to vector<1x128xbf16>
    %37 = vector.broadcast %36 : vector<1x128xbf16> to vector<32x128xbf16>
    %38 = arith.addf %33, %37 : vector<32x128xbf16>
    %39 = arith.extf %38 : vector<32x128xbf16> to vector<32x128xf32>
    %40 = arith.addf %16, %39 : vector<32x128xf32>
    %41 = arith.truncf %40 : vector<32x128xf32> to vector<32x128xbf16>
    %c1_21 = arith.constant 1 : index
    %c0_22 = arith.constant 0 : index
    %c0_23 = arith.constant 0 : index
    %42 = vector.load %arg4[%c1_21, %c0_22, %c0_23] : memref<2x128x128xbf16, #tpu.memory_space<vmem>>, vector<1x128x128xbf16>
    %43 = vector.shape_cast %42 : vector<1x128x128xbf16> to vector<128x128xbf16>
    %cst_24 = arith.constant dense<0.000000e+00> : vector<32x128xf32>
    %44 = tpu.matmul %41, %43, %cst_24 {dimension_numbers = #tpu.dot_dimension_numbers<[1], [0], [0], [1], [0, 0, 1, 1], [], []>} : vector<32x128xbf16>, vector<128x128xbf16>, vector<32x128xf32> -> vector<32x128xf32>
    %45 = arith.truncf %44 : vector<32x128xf32> to vector<32x128xbf16>
    %c1_25 = arith.constant 1 : index
    %c0_26 = arith.constant 0 : index
    %c0_27 = arith.constant 0 : index
    %46 = vector.load %arg5[%c1_25, %c0_26, %c0_27] : memref<2x3x128xf32, #tpu.memory_space<vmem>>, vector<1x1x128xf32>
    %47 = vector.shape_cast %46 : vector<1x1x128xf32> to vector<1x128xf32>
    %48 = arith.truncf %47 : vector<1x128xf32> to vector<1x128xbf16>
    %49 = vector.broadcast %48 : vector<1x128xbf16> to vector<32x128xbf16>
    %50 = arith.addf %45, %49 : vector<32x128xbf16>
    %cst_28 = arith.constant 0.000000e+00 : bf16
    %51 = vector.broadcast %cst_28 : bf16 to vector<32x128xbf16>
    %52 = arith.maximumf %50, %51 : vector<32x128xbf16>
    %c1_29 = arith.constant 1 : index
    %c1_30 = arith.constant 1 : index
    %c0_31 = arith.constant 0 : index
    %53 = vector.load %arg5[%c1_29, %c1_30, %c0_31] : memref<2x3x128xf32, #tpu.memory_space<vmem>>, vector<1x1x128xf32>
    %54 = vector.shape_cast %53 : vector<1x1x128xf32> to vector<1x128xf32>
    %55 = arith.truncf %54 : vector<1x128xf32> to vector<1x128xbf16>
    %56 = vector.broadcast %55 : vector<1x128xbf16> to vector<32x128xbf16>
    %57 = arith.mulf %52, %56 : vector<32x128xbf16>
    %c1_32 = arith.constant 1 : index
    %c2_33 = arith.constant 2 : index
    %c0_34 = arith.constant 0 : index
    %58 = vector.load %arg5[%c1_32, %c2_33, %c0_34] : memref<2x3x128xf32, #tpu.memory_space<vmem>>, vector<1x1x128xf32>
    %59 = vector.shape_cast %58 : vector<1x1x128xf32> to vector<1x128xf32>
    %60 = arith.truncf %59 : vector<1x128xf32> to vector<1x128xbf16>
    %61 = vector.broadcast %60 : vector<1x128xbf16> to vector<32x128xbf16>
    %62 = arith.addf %57, %61 : vector<32x128xbf16>
    %63 = arith.extf %62 : vector<32x128xbf16> to vector<32x128xf32>
    %64 = arith.addf %40, %63 : vector<32x128xf32>
    %65 = arith.truncf %64 : vector<32x128xf32> to vector<32x128xbf16>
    %c0_35 = arith.constant 0 : index
    %c0_36 = arith.constant 0 : index
    %66 = vector.load %arg6[%c0_35, %c0_36] : memref<128x128xbf16, #tpu.memory_space<vmem>>, vector<128x128xbf16>
    %cst_37 = arith.constant dense<0.000000e+00> : vector<32x128xf32>
    %67 = tpu.matmul %65, %66, %cst_37 {dimension_numbers = #tpu.dot_dimension_numbers<[1], [0], [0], [1], [0, 0, 1, 1], [], []>} : vector<32x128xbf16>, vector<128x128xbf16>, vector<32x128xf32> -> vector<32x128xf32>
    %c0_38 = arith.constant 0 : index
    %c0_39 = arith.constant 0 : index
    %68 = vector.load %arg7[%c0_38, %c0_39] : memref<1x128xf32, #tpu.memory_space<vmem>>, vector<1x128xf32>
    %69 = vector.broadcast %68 : vector<1x128xf32> to vector<32x128xf32>
    %70 = arith.addf %67, %69 : vector<32x128xf32>
    %71 = arith.index_cast %1 : i32 to index
    %c0_40 = arith.constant 0 : index
    %72 = vector.load %arg8[%71, %c0_40] : memref<32x128xf32, #tpu.memory_space<vmem>>, vector<32x128xf32>
    tpu.vector_store %arg8[%71, %c0_40], %70 {strides = array<i32>} : memref<32x128xf32, #tpu.memory_space<vmem>>, vector<32x128xf32>,
    %c1_i32 = arith.constant 1 : i32
    return
  }
  func.func @transform_0(%arg0: i32) -> (i32, i32) {
    %c0_i32 = arith.constant 0 : i32
    %c0_i32_0 = arith.constant 0 : i32
    return %arg0, %c0_i32 : i32, i32
  }
  func.func @transform_1(%arg0: i32) -> (i32, i32) {
    %c0_i32 = arith.constant 0 : i32
    %c0_i32_0 = arith.constant 0 : i32
    %c0_i32_1 = arith.constant 0 : i32
    return %c0_i32, %c0_i32_0 : i32, i32
  }
  func.func @transform_2(%arg0: i32) -> (i32, i32) {
    %c0_i32 = arith.constant 0 : i32
    %c0_i32_0 = arith.constant 0 : i32
    %c0_i32_1 = arith.constant 0 : i32
    return %c0_i32, %c0_i32_0 : i32, i32
  }
  func.func @transform_3(%arg0: i32) -> (i32, i32, i32) {
    %c0_i32 = arith.constant 0 : i32
    %c0_i32_0 = arith.constant 0 : i32
    %c0_i32_1 = arith.constant 0 : i32
    %c0_i32_2 = arith.constant 0 : i32
    return %c0_i32, %c0_i32_0, %c0_i32_1 : i32, i32, i32
  }
  func.func @transform_4(%arg0: i32) -> (i32, i32, i32) {
    %c0_i32 = arith.constant 0 : i32
    %c0_i32_0 = arith.constant 0 : i32
    %c0_i32_1 = arith.constant 0 : i32
    %c0_i32_2 = arith.constant 0 : i32
    return %c0_i32, %c0_i32_0, %c0_i32_1 : i32, i32, i32
  }
  func.func @transform_5(%arg0: i32) -> (i32, i32) {
    %c0_i32 = arith.constant 0 : i32
    %c0_i32_0 = arith.constant 0 : i32
    %c0_i32_1 = arith.constant 0 : i32
    return %c0_i32, %c0_i32_0 : i32, i32
  }
  func.func @transform_6(%arg0: i32) -> (i32, i32) {
    %c0_i32 = arith.constant 0 : i32
    %c0_i32_0 = arith.constant 0 : i32
    %c0_i32_1 = arith.constant 0 : i32
    return %c0_i32, %c0_i32_0 : i32, i32
  }
  func.func @transform_7(%arg0: i32) -> (i32, i32) {
    %c0_i32 = arith.constant 0 : i32
    %c0_i32_0 = arith.constant 0 : i32
    return %arg0, %c0_i32 : i32, i32
  }
}

</mosaic_0001>

<llo_original>
// kernel: mlp_skip_forward.1
$region0: #{mlp_skip_forward.1}
  #allocation0 [shape = 'u32[]', space=smem, size = 0x4, offset = 0x4, fixed_abs, tag = 'smem constant byte address 0x4 - core index']
  #allocation1 [shape = 'u32[144,128]{1,0:T(1,128)}', space=vmem, size = 0x12000, scoped, tag = 'internal scratch']
  %s0 = inlined_call_operand.vmem [shape: bf16[64,64], index: 0, kind: input, shape index: {}]
  %s1 = inlined_call_operand.vmem [shape: bf16[64,128], index: 1, kind: input, shape index: {}]
  %s2 = inlined_call_operand.vmem [shape: f32[3,128], index: 2, kind: input, shape index: {}]
  %s3 = inlined_call_operand.vmem [shape: bf16[2,128,128], index: 3, kind: input, shape index: {}]
  %s4 = inlined_call_operand.vmem [shape: f32[2,3,128], index: 4, kind: input, shape index: {}]
  %s5 = inlined_call_operand.hbm [shape: bf16[128,128], index: 5, kind: input, shape index: {}]
  %s6 = inlined_call_operand.vmem [shape: f32[1,128], index: 6, kind: input, shape index: {}]
  %s7 = inlined_call_operand.vmem [shape: f32[64,128], index: 7, kind: output, shape index: {}]
  %s8 = sld [smem:[#allocation0]]
  $region65: #{mlp_skip_forward.1} parent=0
    _
  %s10 = ssub.s32 1, %s8
  %s11 = scalar_select 0, %s10, %s8
  $region1: #{mlp_skip_forward.1} parent=0
    #allocation2 [shape = 'u8[32768]{0}', space=vmem, size = 0x8000, scoped, tag = 'input window, operand 5, single buffered']
    #allocation3 [shape = 's32[2]{0}', space=sflag, size = 0x8, scoped, tag = 'scoped memory for mlp_skip_forward.1']
    %12 = vsyncpa [#allocation3], 0
    loop: start=0, step=1, limit=4
    $region2: #{mlp_skip_forward.1} parent=1 // loop_pre_header
      _
    $region3: #{mlp_skip_forward.1} parent=1 // loop_header
      %s14 = sphi 0, %s18
      %p15 = scmp.ge.s32.totalorder %s14, 4
      %s24 = sphi 0, %s26
      %s27 = sphi 0, %s24
      %s28 = sphi 0, %s27
      %s44 = sphi 0, %s28
      %s48 = sphi 0, %s48
      %s50 = sphi 0, %s48
      %s51 = sphi 0, %s50
      %s65 = sphi 0, %s51
      %s69 = sphi 0, %s69
      %s71 = sphi 0, %s69
      %s72 = sphi 0, %s71
      %s86 = sphi 0, %s72
      %s90 = sphi 0, %s90
      %s92 = sphi 0, %s90
      %s93 = sphi 0, %s92
      %s107 = sphi 0, %s93
      %s111 = sphi 0, %s111
      %s113 = sphi 0, %s111
      %s114 = sphi 0, %s113
      %s128 = sphi 0, %s114
      %s132 = sphi 0, %s132
      %s134 = sphi 0, %s132
      %s135 = sphi 0, %s134
      %s149 = sphi 0, %s135
      %s153 = sphi 0, %s153
      %s155 = sphi 0, %s153
      %s156 = sphi 0, %s155
      %s170 = sphi 0, %s156
      %s176 = sphi 0, %s178
      %s179 = sphi 0, %s176
      %s180 = sphi 0, %s179
      %s196 = sphi 0, %s180
    $region4: #{mlp_skip_forward.1} parent=1 // loop_header_branch
      %17 = sbr.rel (%p15) target = $region8
    $region5: #{mlp_skip_forward.1} parent=1 // loop_body
      %s19 = ssub.s32 %s14, 1
      %s20 = ssub.s32 %s14, 2
      %s21 = sadd.s32 %s14, 1
      %s22 = ssub.s32 %s14, %s21
      %p23 = scmp.eq.s32.totalorder %s22, 0
      %s25 = sadd.s32 %s24, 1
      %s26 = scalar_select %p23, %s24, %s25
      %p29 = pneg %p23
      %p30 = scmp.eq.s32.totalorder %s14, 1
      %p31 = por %p29, %p30
      %p32 = scmp.ne.s32.totalorder %s24, %s27
      %p33 = scmp.eq.s32.totalorder %s14, 0
      %p34 = por %p32, %p33
      %p35 = scmp.ne.s32.totalorder %s24, %s27
      %p36 = scmp.eq.s32.totalorder %s19, 1
      %p37 = por %p35, %p36
      %p38 = scmp.ne.s32.totalorder %s27, %s28
      %p39 = scmp.eq.s32.totalorder %s19, 0
      %p40 = por %p38, %p39
      %p41 = scmp.ne.s32.totalorder %s27, %s28
      %p42 = scmp.eq.s32.totalorder %s20, 1
      %p43 = por %p41, %p42
      %p45 = scmp.ne.s32.totalorder %s28, %s44
      %p46 = scmp.eq.s32.totalorder %s20, 0
      %p47 = por %p45, %p46
      %s49 = sadd.s32 %s48, 1
      %p52 = scmp.eq.s32.totalorder %s14, 1
      %p53 = scmp.ne.s32.totalorder %s48, %s50
      %p54 = scmp.eq.s32.totalorder %s14, 0
      %p55 = por %p53, %p54
      %p56 = scmp.ne.s32.totalorder %s48, %s50
      %p57 = scmp.eq.s32.totalorder %s19, 1
      %p58 = por %p56, %p57
      %p59 = scmp.ne.s32.totalorder %s50, %s51
      %p60 = scmp.eq.s32.totalorder %s19, 0
      %p61 = por %p59, %p60
      %p62 = scmp.ne.s32.totalorder %s50, %s51
      %p63 = scmp.eq.s32.totalorder %s20, 1
      %p64 = por %p62, %p63
      %p66 = scmp.ne.s32.totalorder %s51, %s65
      %p67 = scmp.eq.s32.totalorder %s20, 0
      %p68 = por %p66, %p67
      %s70 = sadd.s32 %s69, 1
      %p73 = scmp.eq.s32.totalorder %s14, 1
      %p74 = scmp.ne.s32.totalorder %s69, %s71
      %p75 = scmp.eq.s32.totalorder %s14, 0
      %p76 = por %p74, %p75
      %p77 = scmp.ne.s32.totalorder %s69, %s71
      %p78 = scmp.eq.s32.totalorder %s19, 1
      %p79 = por %p77, %p78
      %p80 = scmp.ne.s32.totalorder %s71, %s72
      %p81 = scmp.eq.s32.totalorder %s19, 0
      %p82 = por %p80, %p81
      %p83 = scmp.ne.s32.totalorder %s71, %s72
      %p84 = scmp.eq.s32.totalorder %s20, 1
      %p85 = por %p83, %p84
      %p87 = scmp.ne.s32.totalorder %s72, %s86
      %p88 = scmp.eq.s32.totalorder %s20, 0
      %p89 = por %p87, %p88
      %s91 = sadd.s32 %s90, 1
      %p94 = scmp.eq.s32.totalorder %s14, 1
      %p95 = scmp.ne.s32.totalorder %s90, %s92
      %p96 = scmp.eq.s32.totalorder %s14, 0
      %p97 = por %p95, %p96
      %p98 = scmp.ne.s32.totalorder %s90, %s92
      %p99 = scmp.eq.s32.totalorder %s19, 1
      %p100 = por %p98, %p99
      %p101 = scmp.ne.s32.totalorder %s92, %s93
      %p102 = scmp.eq.s32.totalorder %s19, 0
      %p103 = por %p101, %p102
      %p104 = scmp.ne.s32.totalorder %s92, %s93
      %p105 = scmp.eq.s32.totalorder %s20, 1
      %p106 = por %p104, %p105
      %p108 = scmp.ne.s32.totalorder %s93, %s107
      %p109 = scmp.eq.s32.totalorder %s20, 0
      %p110 = por %p108, %p109
      %s112 = sadd.s32 %s111, 1
      %p115 = scmp.eq.s32.totalorder %s14, 1
      %p116 = scmp.ne.s32.totalorder %s111, %s113
      %p117 = scmp.eq.s32.totalorder %s14, 0
      %p118 = por %p116, %p117
      %p119 = scmp.ne.s32.totalorder %s111, %s113
      %p120 = scmp.eq.s32.totalorder %s19, 1
      %p121 = por %p119, %p120
      %p122 = scmp.ne.s32.totalorder %s113, %s114
      %p123 = scmp.eq.s32.totalorder %s19, 0
      %p124 = por %p122, %p123
      %p125 = scmp.ne.s32.totalorder %s113, %s114
      %p126 = scmp.eq.s32.totalorder %s20, 1
      %p127 = por %p125, %p126
      %p129 = scmp.ne.s32.totalorder %s114, %s128
      %p130 = scmp.eq.s32.totalorder %s20, 0
      %p131 = por %p129, %p130
      %s133 = sadd.s32 %s132, 1
      %p136 = scmp.eq.s32.totalorder %s14, 1
      %p137 = scmp.ne.s32.totalorder %s132, %s134
      %p138 = scmp.eq.s32.totalorder %s14, 0
      %p139 = por %p137, %p138
      %p140 = scmp.ne.s32.totalorder %s132, %s134
      %p141 = scmp.eq.s32.totalorder %s19, 1
      %p142 = por %p140, %p141
      %p143 = scmp.ne.s32.totalorder %s134, %s135
      %p144 = scmp.eq.s32.totalorder %s19, 0
      %p145 = por %p143, %p144
      %p146 = scmp.ne.s32.totalorder %s134, %s135
      %p147 = scmp.eq.s32.totalorder %s20, 1
      %p148 = por %p146, %p147
      %p150 = scmp.ne.s32.totalorder %s135, %s149
      %p151 = scmp.eq.s32.totalorder %s20, 0
      %p152 = por %p150, %p151
      %s154 = sadd.s32 %s153, 1
      %p157 = scmp.eq.s32.totalorder %s14, 1
      %p158 = scmp.ne.s32.totalorder %s153, %s155
      %p159 = scmp.eq.s32.totalorder %s14, 0
      %p160 = por %p158, %p159
      %p161 = scmp.ne.s32.totalorder %s153, %s155
      %p162 = scmp.eq.s32.totalorder %s19, 1
      %p163 = por %p161, %p162
      %p164 = scmp.ne.s32.totalorder %s155, %s156
      %p165 = scmp.eq.s32.totalorder %s19, 0
      %p166 = por %p164, %p165
      %p167 = scmp.ne.s32.totalorder %s155, %s156
      %p168 = scmp.eq.s32.totalorder %s20, 1
      %p169 = por %p167, %p168
      %p171 = scmp.ne.s32.totalorder %s156, %s170
      %p172 = scmp.eq.s32.totalorder %s20, 0
      %p173 = por %p171, %p172
      %s174 = ssub.s32 %s14, %s21
      %p175 = scmp.eq.s32.totalorder %s174, 0
      %s177 = sadd.s32 %s176, 1
      %s178 = scalar_select %p175, %s176, %s177
      %p181 = pneg %p175
      %p182 = scmp.eq.s32.totalorder %s14, 1
      %p183 = por %p181, %p182
      %p184 = scmp.ne.s32.totalorder %s176, %s179
      %p185 = scmp.eq.s32.totalorder %s14, 0
      %p186 = por %p184, %p185
      %p187 = scmp.ne.s32.totalorder %s176, %s179
      %p188 = scmp.eq.s32.totalorder %s19, 1
      %p189 = por %p187, %p188
      %p190 = scmp.ne.s32.totalorder %s179, %s180
      %p191 = scmp.eq.s32.totalorder %s19, 0
      %p192 = por %p190, %p191
      %p193 = scmp.ne.s32.totalorder %s179, %s180
      %p194 = scmp.eq.s32.totalorder %s20, 1
      %p195 = por %p193, %p194
      %p197 = scmp.ne.s32.totalorder %s180, %s196
      %p198 = scmp.eq.s32.totalorder %s20, 0
      %p199 = por %p197, %p198
      %p200 = scmp.le.s32.totalorder 1, %s14
      %p201 = scmp.lt.s32.totalorder %s14, 3
      %p202 = pnand %p200, %p201
      %p203 = pneg %p202
      // Predicated region
      $region9: #{mlp_skip_forward.1} parent=5 // pred_check
        _
      $region10: #{mlp_skip_forward.1} parent=5 // pred_check_branch
        %205 = sbr.rel (%p202) target = $region12
      $region11: #{mlp_skip_forward.1} parent=5 // pred_region
        %s206 = ssub.s32 %s14, 1
        // Predicated region
        $region13: #{mlp_skip_forward.1} parent=11 // pred_check
          %p207 = pneg %p61
        $region14: #{mlp_skip_forward.1} parent=11 // pred_check_branch
          %209 = sbr.rel (%p207) target = $region16
        $region15: #{mlp_skip_forward.1} parent=11 // pred_region
          _
        $region16: #{mlp_skip_forward.1} parent=11 // pred_fallthru
          _
        // Predicated region
        $region17: #{mlp_skip_forward.1} parent=11 // pred_check
          %p210 = pneg %p82
        $region18: #{mlp_skip_forward.1} parent=11 // pred_check_branch
          %212 = sbr.rel (%p210) target = $region20
        $region19: #{mlp_skip_forward.1} parent=11 // pred_region
          _
        $region20: #{mlp_skip_forward.1} parent=11 // pred_fallthru
          _
        // Predicated region
        $region21: #{mlp_skip_forward.1} parent=11 // pred_check
          %p213 = pneg %p103
        $region22: #{mlp_skip_forward.1} parent=11 // pred_check_branch
          %215 = sbr.rel (%p213) target = $region24
        $region23: #{mlp_skip_forward.1} parent=11 // pred_region
          _
        $region24: #{mlp_skip_forward.1} parent=11 // pred_fallthru
          _
        // Predicated region
        $region25: #{mlp_skip_forward.1} parent=11 // pred_check
          %p216 = pneg %p124
        $region26: #{mlp_skip_forward.1} parent=11 // pred_check_branch
          %218 = sbr.rel (%p216) target = $region28
        $region27: #{mlp_skip_forward.1} parent=11 // pred_region
          _
        $region28: #{mlp_skip_forward.1} parent=11 // pred_fallthru
          _
        // Predicated region
        $region29: #{mlp_skip_forward.1} parent=11 // pred_check
          %p219 = pneg %p145
        $region30: #{mlp_skip_forward.1} parent=11 // pred_check_branch
          %221 = sbr.rel (%p219) target = $region32
        $region31: #{mlp_skip_forward.1} parent=11 // pred_region
          %s223 = ssub.s32 1024, 1024
          %224 = vsyncadd [#allocation3], %s223
          %s225 = sshll.u32 [#allocation2], 4
          %s226 = int_to_ptr.vmem [resolvable:$true] %s225
          %231 = dma.hbm_to_vmem [thread:$0]  %s5, 1024, %s226, [#allocation3], 64, 64, 4
        $region32: #{mlp_skip_forward.1} parent=11 // pred_fallthru
          _
        // Predicated region
        $region33: #{mlp_skip_forward.1} parent=11 // pred_check
          %p232 = pneg %p166
        $region34: #{mlp_skip_forward.1} parent=11 // pred_check_branch
          %234 = sbr.rel (%p232) target = $region36
        $region35: #{mlp_skip_forward.1} parent=11 // pred_region
          _
        $region36: #{mlp_skip_forward.1} parent=11 // pred_fallthru
          _
      $region12: #{mlp_skip_forward.1} parent=5 // pred_fallthru
        _
      %p235 = scmp.lt.s32.totalorder %s14, 2
      // Predicated region
      $region37: #{mlp_skip_forward.1} parent=5 // pred_check
        %p236 = pneg %p235
      $region38: #{mlp_skip_forward.1} parent=5 // pred_check_branch
        %238 = sbr.rel (%p236) target = $region40
      $region39: #{mlp_skip_forward.1} parent=5 // pred_region
        // Predicated region
        $region41: #{mlp_skip_forward.1} parent=39 // pred_check
          %p239 = pneg %p34
        $region42: #{mlp_skip_forward.1} parent=39 // pred_check_branch
          %241 = sbr.rel (%p239) target = $region44
        $region43: #{mlp_skip_forward.1} parent=39 // pred_region
          %s242 = smul.u32 4, %s14
          %p243 = scmp.lt.s32.totalorder %s242, 7
          %s244 = scalar_select %p243, %s242, 7
          %s245 = smul.addr %s244, 4
          %s246 = scalar_lea.vmem %s0, %s245
          %s247 = smul.u32 4, %s14
        $region44: #{mlp_skip_forward.1} parent=39 // pred_fallthru
          _
      $region40: #{mlp_skip_forward.1} parent=5 // pred_fallthru
        _
      %p248 = scmp.le.s32.totalorder 1, %s14
      %p249 = scmp.lt.s32.totalorder %s14, 3
      %p250 = pnand %p248, %p249
      %p251 = pneg %p250
      // Predicated region
      $region45: #{mlp_skip_forward.1} parent=5 // pred_check
        _
      $region46: #{mlp_skip_forward.1} parent=5 // pred_check_branch
        %253 = sbr.rel (%p250) target = $region48
      $region47: #{mlp_skip_forward.1} parent=5 // pred_region
        %s254 = ssub.s32 %s14, 1
        // Predicated region
        $region49: #{mlp_skip_forward.1} parent=47 // pred_check
          %p255 = pneg %p145
        $region50: #{mlp_skip_forward.1} parent=47 // pred_check_branch
          %257 = sbr.rel (%p255) target = $region52
        $region51: #{mlp_skip_forward.1} parent=47 // pred_region
          %258 = dma.done [#allocation3], 1024
        $region52: #{mlp_skip_forward.1} parent=47 // pred_fallthru
          _
        %s259 = smul.u32 4, %s19
        %p260 = scmp.lt.s32.totalorder %s259, 7
        %s261 = scalar_select %p260, %s259, 7
        %s262 = smul.addr %s261, 4
        %s263 = scalar_lea.vmem %s0, %s262
        %p264 = pneg %p40
        %p265 = pneg %p37
        %p266 = pneg %p61
        %p267 = pneg %p58
        %p268 = pneg %p82
        %p269 = pneg %p79
        %p270 = pneg %p103
        %p271 = pneg %p100
        %p272 = pneg %p124
        %p273 = pneg %p121
        %p274 = pneg %p145
        %p275 = pneg %p142
        %p276 = pneg %p166
        %p277 = pneg %p163
        %p278 = pneg %p192
        %p279 = pneg %p189
        %s280 = smul.u32 4, %s19
        %p281 = scmp.lt.s32.totalorder %s280, 7
        %s282 = scalar_select %p281, %s280, 7
        %s283 = smul.addr %s282, 8
        %s284 = scalar_lea.vmem %s7, %s283
        %s285 = smul.u32 4, %s19
        %p286 = scmp.lt.s32.totalorder %s285, 7
        %s287 = scalar_select %p286, %s285, 7
        %s288 = smul.addr %s287, 4
        %s289 = scalar_lea.vmem %s0, %s288
        %s290 = smul.u32 4, %s19
        %s291 = smul.u32 4, %s19
        %p292 = scmp.lt.s32.totalorder %s291, 7
        %s293 = scalar_select %p292, %s291, 7
        %s294 = smul.addr %s293, 8
        %s295 = scalar_lea.vmem %s7, %s294
        %s296 = smul.u32 4, %s19
        %v298 = vld [vmem:[%s289] sm:$0xf]
        %v299 = vld [vmem:[%s289 + $0x4] sm:$0xf]
        %v300 = vld [vmem:[%s289 + $0x8] sm:$0xf]
        %v301 = vld [vmem:[%s289 + $0xc] sm:$0xf]
        %v302 = vld [vmem:[%s1] sm:$0xf]
        %v303 = vld [vmem:[%s1 + $0x4] sm:$0xf]
        %v304 = vld [vmem:[%s1 + $0x8] sm:$0xf]
        %v305 = vld [vmem:[%s1 + $0xc] sm:$0xf]
        %v306 = vld [vmem:[%s1 + $0x10] sm:$0xf]
        %v307 = vld [vmem:[%s1 + $0x14] sm:$0xf]
        %v308 = vld [vmem:[%s1 + $0x18] sm:$0xf]
        %v309 = vld [vmem:[%s1 + $0x1c] sm:$0xf]
        %v310 = vld [vmem:[%s2] sm:$0x1]
        %v311 = vlaneseq
        %v312 = vshrl.u32 %v311, 7
        %v313 = vsub.s32 0, %v312
        %v314 = vrot.slane %v310, %v313
        %v319 = vunpack.c.l.b16 %v298
        %v320 = vunpack.c.l.b16 %v299
        %v321 = vunpack.c.l.b16 %v300
        %v322 = vunpack.c.l.b16 %v301
        %v323 = vpack.c.b16 %v320, %v319
        %v324 = vpack.c.b16 %v322, %v321
        %v333 = vunpack.c.l.b16 %v302
        %v334 = vunpack.c.l.b16 %v303
        %v335 = vunpack.c.l.b16 %v304
        %v336 = vunpack.c.l.b16 %v305
        %v337 = vunpack.c.l.b16 %v306
        %v338 = vunpack.c.l.b16 %v307
        %v339 = vunpack.c.l.b16 %v308
        %v340 = vunpack.c.l.b16 %v309
        %v341 = vpack.c.b16 %v334, %v333
        %v342 = vpack.c.b16 %v336, %v335
        %v343 = vpack.c.b16 %v338, %v337
        %v344 = vpack.c.b16 %v340, %v339
        %vm349 = vcmask 523264
        %v351 = vsel %vm349, %v323, 0
        %v354 = vsel %vm349, %v324, 0
        %356 = vmatprep.subr.bf16.mxu0 0
        %357 = vmatpush1.bf16.msra.mxu0 0
        %358 = vmatprep.subr.bf16.mxu0 0
        %359 = vmatpush1.bf16.msra.mxu0 0
        %360 = vmatprep.subr.bf16.mxu0 0
        %361 = vmatpush1.bf16.msra.mxu0 0
        %362 = vmatprep.subr.bf16.mxu0 0
        %363 = vmatpush1.bf16.msra.mxu0 0
        %364 = vmatprep.subr.bf16.mxu0 0
        %365 = vmatpush1.bf16.msra.mxu0 %v344
        %366 = vmatprep.subr.bf16.mxu0 0
        %367 = vmatpush1.bf16.msra.mxu0 %v343
        %368 = vmatprep.subr.bf16.mxu0 0
        %369 = vmatpush1.bf16.msra.mxu0 %v342
        %370 = vmatprep.subr.bf16.mxu0 0
        %371 = vmatpush1.bf16.msra.mxu0 %v341
        %372 = vmatprep.subr.bf16.mxu0 0
        %373 = vmatpush2.bf16.msra.mxu0 0
        %374 = vmatprep.subr.bf16.mxu0 0
        %375 = vmatpush2.bf16.msra.mxu0 0
        %376 = vmatprep.subr.bf16.mxu0 0
        %377 = vmatpush2.bf16.msra.mxu0 0
        %378 = vmatprep.subr.bf16.mxu0 0
        %379 = vmatpush2.bf16.msra.mxu0 0
        %380 = vmatprep.subr.bf16.mxu0 0
        %381 = vmatpush2.bf16.msra.mxu0 0
        %382 = vmatprep.subr.bf16.mxu0 0
        %383 = vmatpush2.bf16.msra.mxu0 0
        %384 = vmatprep.subr.bf16.mxu0 0
        %385 = vmatpush2.bf16.msra.mxu0 0
        %386 = vmatprep.subr.bf16.mxu0 0
        %387 = vmatpush2.bf16.msra.mxu0 0
        %388 = vmatprep.mubr.bf16.mxu0 0
        %389 = vmatmul.mubr.bf16.gmra.mxu0 %v351
        %v390 = vpop.f32.mrf.mxu0
        %v391 = vadd.f32 %v314, %v390
        %v392 = vpop.f32.mrf.mxu0
        %v393 = vpop.f32.mrf.mxu0
        %v394 = vadd.f32 %v314, %v393
        %v395 = vpop.f32.mrf.mxu0
        %396 = vmatprep.mubr.bf16.mxu0 0
        %397 = vmatmul.mubr.bf16.gmra.mxu0 %v354
        %v398 = vpop.f32.mrf.mxu0
        %v399 = vadd.f32 %v314, %v398
        %v400 = vpop.f32.mrf.mxu0
        %v401 = vpop.f32.mrf.mxu0
        %v402 = vadd.f32 %v314, %v401
        %v403 = vpop.f32.mrf.mxu0
        %404 = vdwg.mxu0
        %v405 = vmax.f32 %v391, 0.0
        %v406 = vmax.f32 %v394, 0.0
        %v407 = vmax.f32 %v399, 0.0
        %v408 = vmax.f32 %v402, 0.0
        %v409 = vld [vmem:[%s2 + $0x1] sm:$0x1]
        %v410 = vlaneseq
        %v411 = vshrl.u32 %v410, 7
        %v412 = vsub.s32 0, %v411
        %v413 = vrot.slane %v409, %v412
        %v414 = vmul.f32 %v405, %v413
        %v415 = vmul.f32 %v406, %v413
        %v416 = vmul.f32 %v407, %v413
        %v417 = vmul.f32 %v408, %v413
        %v418 = vld [vmem:[%s2 + $0x2] sm:$0x1]
        %v419 = vlaneseq
        %v420 = vshrl.u32 %v419, 7
        %v421 = vsub.s32 0, %v420
        %v422 = vrot.slane %v418, %v421
        %v423 = vadd.f32 %v414, %v422
        %v424 = vadd.f32 %v415, %v422
        %v425 = vadd.f32 %v416, %v422
        %v426 = vadd.f32 %v417, %v422
        %v427 = vpack.c.bf16 %v424, %v423
        %v428 = vpack.c.bf16 %v426, %v425
        %v429 = vld [vmem:[%s3] sm:$0xf]
        %v430 = vld [vmem:[%s3 + $0x4] sm:$0xf]
        %v431 = vld [vmem:[%s3 + $0x8] sm:$0xf]
        %v432 = vld [vmem:[%s3 + $0xc] sm:$0xf]
        %v433 = vld [vmem:[%s3 + $0x10] sm:$0xf]
        %v434 = vld [vmem:[%s3 + $0x14] sm:$0xf]
        %v435 = vld [vmem:[%s3 + $0x18] sm:$0xf]
        %v436 = vld [vmem:[%s3 + $0x1c] sm:$0xf]
        %v437 = vld [vmem:[%s3 + $0x20] sm:$0xf]
        %v438 = vld [vmem:[%s3 + $0x24] sm:$0xf]
        %v439 = vld [vmem:[%s3 + $0x28] sm:$0xf]
        %v440 = vld [vmem:[%s3 + $0x2c] sm:$0xf]
        %v441 = vld [vmem:[%s3 + $0x30] sm:$0xf]
        %v442 = vld [vmem:[%s3 + $0x34] sm:$0xf]
        %v443 = vld [vmem:[%s3 + $0x38] sm:$0xf]
        %v444 = vld [vmem:[%s3 + $0x3c] sm:$0xf]
        %v461 = vunpack.c.l.b16 %v429
        %v462 = vunpack.c.l.b16 %v430
        %v463 = vunpack.c.l.b16 %v431
        %v464 = vunpack.c.l.b16 %v432
        %v465 = vunpack.c.l.b16 %v433
        %v466 = vunpack.c.l.b16 %v434
        %v467 = vunpack.c.l.b16 %v435
        %v468 = vunpack.c.l.b16 %v436
        %v469 = vunpack.c.l.b16 %v437
        %v470 = vunpack.c.l.b16 %v438
        %v471 = vunpack.c.l.b16 %v439
        %v472 = vunpack.c.l.b16 %v440
        %v473 = vunpack.c.l.b16 %v441
        %v474 = vunpack.c.l.b16 %v442
        %v475 = vunpack.c.l.b16 %v443
        %v476 = vunpack.c.l.b16 %v444
        %v477 = vpack.c.b16 %v462, %v461
        %v478 = vpack.c.b16 %v464, %v463
        %v479 = vpack.c.b16 %v466, %v465
        %v480 = vpack.c.b16 %v468, %v467
        %v481 = vpack.c.b16 %v470, %v469
        %v482 = vpack.c.b16 %v472, %v471
        %v483 = vpack.c.b16 %v474, %v473
        %v484 = vpack.c.b16 %v476, %v475
        %493 = vmatprep.subr.bf16.mxu0 0
        %494 = vmatpush1.bf16.msra.mxu0 %v484
        %495 = vmatprep.subr.bf16.mxu0 0
        %496 = vmatpush1.bf16.msra.mxu0 %v483
        %497 = vmatprep.subr.bf16.mxu0 0
        %498 = vmatpush1.bf16.msra.mxu0 %v482
        %499 = vmatprep.subr.bf16.mxu0 0
        %500 = vmatpush1.bf16.msra.mxu0 %v481
        %501 = vmatprep.subr.bf16.mxu0 0
        %502 = vmatpush1.bf16.msra.mxu0 %v480
        %503 = vmatprep.subr.bf16.mxu0 0
        %504 = vmatpush1.bf16.msra.mxu0 %v479
        %505 = vmatprep.subr.bf16.mxu0 0
        %506 = vmatpush1.bf16.msra.mxu0 %v478
        %507 = vmatprep.subr.bf16.mxu0 0
        %508 = vmatpush1.bf16.msra.mxu0 %v477
        %509 = vmatprep.subr.bf16.mxu0 0
        %510 = vmatpush2.bf16.msra.mxu0 0
        %511 = vmatprep.subr.bf16.mxu0 0
        %512 = vmatpush2.bf16.msra.mxu0 0
        %513 = vmatprep.subr.bf16.mxu0 0
        %514 = vmatpush2.bf16.msra.mxu0 0
        %515 = vmatprep.subr.bf16.mxu0 0
        %516 = vmatpush2.bf16.msra.mxu0 0
        %517 = vmatprep.subr.bf16.mxu0 0
        %518 = vmatpush2.bf16.msra.mxu0 0
        %519 = vmatprep.subr.bf16.mxu0 0
        %520 = vmatpush2.bf16.msra.mxu0 0
        %521 = vmatprep.subr.bf16.mxu0 0
        %522 = vmatpush2.bf16.msra.mxu0 0
        %523 = vmatprep.subr.bf16.mxu0 0
        %524 = vmatpush2.bf16.msra.mxu0 0
        %525 = vmatprep.mubr.bf16.mxu0 0
        %526 = vmatmul.mubr.bf16.gmra.mxu0 %v427
        %v527 = vpop.f32.mrf.mxu0
        %v528 = vadd.f32 0.0, %v527
        %v529 = vpop.f32.mrf.mxu0
        %v530 = vpop.f32.mrf.mxu0
        %v531 = vadd.f32 0.0, %v530
        %v532 = vpop.f32.mrf.mxu0
        %533 = vmatprep.mubr.bf16.mxu0 0
        %534 = vmatmul.mubr.bf16.gmra.mxu0 %v428
        %v535 = vpop.f32.mrf.mxu0
        %v536 = vadd.f32 0.0, %v535
        %v537 = vpop.f32.mrf.mxu0
        %v538 = vpop.f32.mrf.mxu0
        %v539 = vadd.f32 0.0, %v538
        %v540 = vpop.f32.mrf.mxu0
        %541 = vdwg.mxu0
        %v542 = vpack.c.bf16 %v531, %v528
        %v543 = vpack.c.bf16 %v539, %v536
        %v544 = vld [vmem:[%s4] sm:$0x1]
        %v545 = vpack.c.bf16 %v544, %v544
        %v547 = vpack.i.b16 %v545, %v545
        %v549 = vlaneseq
        %v550 = vshrl.u32 %v549, 7
        %v551 = vsub.s32 0, %v550
        %v552 = vrot.slane %v547, %v551
        %v553 = vadd.bf16 %v542, %v552
        %v554 = vadd.bf16 %v543, %v552
        %v555 = vmax.bf16 %v553, 0
        %v556 = vmax.bf16 %v554, 0
        %v557 = vld [vmem:[%s4 + $0x1] sm:$0x1]
        %v558 = vpack.c.bf16 %v557, %v557
        %v560 = vpack.i.b16 %v558, %v558
        %v562 = vlaneseq
        %v563 = vshrl.u32 %v562, 7
        %v564 = vsub.s32 0, %v563
        %v565 = vrot.slane %v560, %v564
        %v566 = vmul.bf16 %v555, %v565
        %v567 = vmul.bf16 %v556, %v565
        %v568 = vld [vmem:[%s4 + $0x2] sm:$0x1]
        %v569 = vpack.c.bf16 %v568, %v568
        %v571 = vpack.i.b16 %v569, %v569
        %v573 = vlaneseq
        %v574 = vshrl.u32 %v573, 7
        %v575 = vsub.s32 0, %v574
        %v576 = vrot.slane %v571, %v575
        %v577 = vadd.bf16 %v566, %v576
        %v578 = vadd.bf16 %v567, %v576
        %v579 = vunpack.c.l.bf16 %v577
        %v580 = vunpack.c.h.bf16 %v577
        %v581 = vunpack.c.l.bf16 %v578
        %v582 = vunpack.c.h.bf16 %v578
        %v583 = vadd.f32 %v423, %v579
        %v584 = vadd.f32 %v424, %v580
        %v585 = vadd.f32 %v425, %v581
        %v586 = vadd.f32 %v426, %v582
        %v587 = vpack.c.bf16 %v584, %v583
        %v588 = vpack.c.bf16 %v586, %v585
        %s589 = scalar_lea.vmem %s3, 64
        %v590 = vld [vmem:[%s589] sm:$0xf]
        %v591 = vld [vmem:[%s589 + $0x4] sm:$0xf]
        %v592 = vld [vmem:[%s589 + $0x8] sm:$0xf]
        %v593 = vld [vmem:[%s589 + $0xc] sm:$0xf]
        %v594 = vld [vmem:[%s589 + $0x10] sm:$0xf]
        %v595 = vld [vmem:[%s589 + $0x14] sm:$0xf]
        %v596 = vld [vmem:[%s589 + $0x18] sm:$0xf]
        %v597 = vld [vmem:[%s589 + $0x1c] sm:$0xf]
        %v598 = vld [vmem:[%s589 + $0x20] sm:$0xf]
        %v599 = vld [vmem:[%s589 + $0x24] sm:$0xf]
        %v600 = vld [vmem:[%s589 + $0x28] sm:$0xf]
        %v601 = vld [vmem:[%s589 + $0x2c] sm:$0xf]
        %v602 = vld [vmem:[%s589 + $0x30] sm:$0xf]
        %v603 = vld [vmem:[%s589 + $0x34] sm:$0xf]
        %v604 = vld [vmem:[%s589 + $0x38] sm:$0xf]
        %v605 = vld [vmem:[%s589 + $0x3c] sm:$0xf]
        %v622 = vunpack.c.l.b16 %v590
        %v623 = vunpack.c.l.b16 %v591
        %v624 = vunpack.c.l.b16 %v592
        %v625 = vunpack.c.l.b16 %v593
        %v626 = vunpack.c.l.b16 %v594
        %v627 = vunpack.c.l.b16 %v595
        %v628 = vunpack.c.l.b16 %v596
        %v629 = vunpack.c.l.b16 %v597
        %v630 = vunpack.c.l.b16 %v598
        %v631 = vunpack.c.l.b16 %v599
        %v632 = vunpack.c.l.b16 %v600
        %v633 = vunpack.c.l.b16 %v601
        %v634 = vunpack.c.l.b16 %v602
        %v635 = vunpack.c.l.b16 %v603
        %v636 = vunpack.c.l.b16 %v604
        %v637 = vunpack.c.l.b16 %v605
        %v638 = vpack.c.b16 %v623, %v622
        %v639 = vpack.c.b16 %v625, %v624
        %v640 = vpack.c.b16 %v627, %v626
        %v641 = vpack.c.b16 %v629, %v628
        %v642 = vpack.c.b16 %v631, %v630
        %v643 = vpack.c.b16 %v633, %v632
        %v644 = vpack.c.b16 %v635, %v634
        %v645 = vpack.c.b16 %v637, %v636
        %654 = vmatprep.subr.bf16.mxu0 0
        %655 = vmatpush1.bf16.msra.mxu0 %v645
        %656 = vmatprep.subr.bf16.mxu0 0
        %657 = vmatpush1.bf16.msra.mxu0 %v644
        %658 = vmatprep.subr.bf16.mxu0 0
        %659 = vmatpush1.bf16.msra.mxu0 %v643
        %660 = vmatprep.subr.bf16.mxu0 0
        %661 = vmatpush1.bf16.msra.mxu0 %v642
        %662 = vmatprep.subr.bf16.mxu0 0
        %663 = vmatpush1.bf16.msra.mxu0 %v641
        %664 = vmatprep.subr.bf16.mxu0 0
        %665 = vmatpush1.bf16.msra.mxu0 %v640
        %666 = vmatprep.subr.bf16.mxu0 0
        %667 = vmatpush1.bf16.msra.mxu0 %v639
        %668 = vmatprep.subr.bf16.mxu0 0
        %669 = vmatpush1.bf16.msra.mxu0 %v638
        %670 = vmatprep.subr.bf16.mxu0 0
        %671 = vmatpush2.bf16.msra.mxu0 0
        %672 = vmatprep.subr.bf16.mxu0 0
        %673 = vmatpush2.bf16.msra.mxu0 0
        %674 = vmatprep.subr.bf16.mxu0 0
        %675 = vmatpush2.bf16.msra.mxu0 0
        %676 = vmatprep.subr.bf16.mxu0 0
        %677 = vmatpush2.bf16.msra.mxu0 0
        %678 = vmatprep.subr.bf16.mxu0 0
        %679 = vmatpush2.bf16.msra.mxu0 0
        %680 = vmatprep.subr.bf16.mxu0 0
        %681 = vmatpush2.bf16.msra.mxu0 0
        %682 = vmatprep.subr.bf16.mxu0 0
        %683 = vmatpush2.bf16.msra.mxu0 0
        %684 = vmatprep.subr.bf16.mxu0 0
        %685 = vmatpush2.bf16.msra.mxu0 0
        %686 = vmatprep.mubr.bf16.mxu0 0
        %687 = vmatmul.mubr.bf16.gmra.mxu0 %v587
        %v688 = vpop.f32.mrf.mxu0
        %v689 = vadd.f32 0.0, %v688
        %v690 = vpop.f32.mrf.mxu0
        %v691 = vpop.f32.mrf.mxu0
        %v692 = vadd.f32 0.0, %v691
        %v693 = vpop.f32.mrf.mxu0
        %694 = vmatprep.mubr.bf16.mxu0 0
        %695 = vmatmul.mubr.bf16.gmra.mxu0 %v588
        %v696 = vpop.f32.mrf.mxu0
        %v697 = vadd.f32 0.0, %v696
        %v698 = vpop.f32.mrf.mxu0
        %v699 = vpop.f32.mrf.mxu0
        %v700 = vadd.f32 0.0, %v699
        %v701 = vpop.f32.mrf.mxu0
        %702 = vdwg.mxu0
        %v703 = vpack.c.bf16 %v692, %v689
        %v704 = vpack.c.bf16 %v700, %v697
        %s705 = scalar_lea.vmem %s4, 4
        %v706 = vld [vmem:[%s705] sm:$0x1]
        %v707 = vpack.c.bf16 %v706, %v706
        %v709 = vpack.i.b16 %v707, %v707
        %v711 = vlaneseq
        %v712 = vshrl.u32 %v711, 7
        %v713 = vsub.s32 0, %v712
        %v714 = vrot.slane %v709, %v713
        %v715 = vadd.bf16 %v703, %v714
        %v716 = vadd.bf16 %v704, %v714
        %v717 = vmax.bf16 %v715, 0
        %v718 = vmax.bf16 %v716, 0
        %v719 = vld [vmem:[%s705 + $0x1] sm:$0x1]
        %v720 = vpack.c.bf16 %v719, %v719
        %v722 = vpack.i.b16 %v720, %v720
        %v724 = vlaneseq
        %v725 = vshrl.u32 %v724, 7
        %v726 = vsub.s32 0, %v725
        %v727 = vrot.slane %v722, %v726
        %v728 = vmul.bf16 %v717, %v727
        %v729 = vmul.bf16 %v718, %v727
        %v730 = vld [vmem:[%s705 + $0x2] sm:$0x1]
        %v731 = vpack.c.bf16 %v730, %v730
        %v733 = vpack.i.b16 %v731, %v731
        %v735 = vlaneseq
        %v736 = vshrl.u32 %v735, 7
        %v737 = vsub.s32 0, %v736
        %v738 = vrot.slane %v733, %v737
        %v739 = vadd.bf16 %v728, %v738
        %v740 = vadd.bf16 %v729, %v738
        %v741 = vunpack.c.l.bf16 %v739
        %v742 = vunpack.c.h.bf16 %v739
        %v743 = vunpack.c.l.bf16 %v740
        %v744 = vunpack.c.h.bf16 %v740
        %v745 = vadd.f32 %v583, %v741
        %v746 = vadd.f32 %v584, %v742
        %v747 = vadd.f32 %v585, %v743
        %v748 = vadd.f32 %v586, %v744
        %v749 = vpack.c.bf16 %v746, %v745
        %v750 = vpack.c.bf16 %v748, %v747
        %v751 = vld [vmem:[#allocation2] sm:$0xf]
        %v752 = vld [vmem:[#allocation2 + $0x4] sm:$0xf]
        %v753 = vld [vmem:[#allocation2 + $0x8] sm:$0xf]
        %v754 = vld [vmem:[#allocation2 + $0xc] sm:$0xf]
        %v755 = vld [vmem:[#allocation2 + $0x10] sm:$0xf]
        %v756 = vld [vmem:[#allocation2 + $0x14] sm:$0xf]
        %v757 = vld [vmem:[#allocation2 + $0x18] sm:$0xf]
        %v758 = vld [vmem:[#allocation2 + $0x1c] sm:$0xf]
        %v759 = vld [vmem:[#allocation2 + $0x20] sm:$0xf]
        %v760 = vld [vmem:[#allocation2 + $0x24] sm:$0xf]
        %v761 = vld [vmem:[#allocation2 + $0x28] sm:$0xf]
        %v762 = vld [vmem:[#allocation2 + $0x2c] sm:$0xf]
        %v763 = vld [vmem:[#allocation2 + $0x30] sm:$0xf]
        %v764 = vld [vmem:[#allocation2 + $0x34] sm:$0xf]
        %v765 = vld [vmem:[#allocation2 + $0x38] sm:$0xf]
        %v766 = vld [vmem:[#allocation2 + $0x3c] sm:$0xf]
        %v767 = vld [vmem:[%s6] sm:$0x1]
        %v769 = vlaneseq
        %v770 = vshrl.u32 %v769, 7
        %v771 = vsub.s32 0, %v770
        %v772 = vrot.slane %v767, %v771
        %v790 = vunpack.c.l.b16 %v751
        %v791 = vunpack.c.l.b16 %v752
        %v792 = vunpack.c.l.b16 %v753
        %v793 = vunpack.c.l.b16 %v754
        %v794 = vunpack.c.l.b16 %v755
        %v795 = vunpack.c.l.b16 %v756
        %v796 = vunpack.c.l.b16 %v757
        %v797 = vunpack.c.l.b16 %v758
        %v798 = vunpack.c.l.b16 %v759
        %v799 = vunpack.c.l.b16 %v760
        %v800 = vunpack.c.l.b16 %v761
        %v801 = vunpack.c.l.b16 %v762
        %v802 = vunpack.c.l.b16 %v763
        %v803 = vunpack.c.l.b16 %v764
        %v804 = vunpack.c.l.b16 %v765
        %v805 = vunpack.c.l.b16 %v766
        %v806 = vpack.c.b16 %v791, %v790
        %v807 = vpack.c.b16 %v793, %v792
        %v808 = vpack.c.b16 %v795, %v794
        %v809 = vpack.c.b16 %v797, %v796
        %v810 = vpack.c.b16 %v799, %v798
        %v811 = vpack.c.b16 %v801, %v800
        %v812 = vpack.c.b16 %v803, %v802
        %v813 = vpack.c.b16 %v805, %v804
        %822 = vmatprep.subr.bf16.mxu0 0
        %823 = vmatpush1.bf16.msra.mxu0 %v813
        %824 = vmatprep.subr.bf16.mxu0 0
        %825 = vmatpush1.bf16.msra.mxu0 %v812
        %826 = vmatprep.subr.bf16.mxu0 0
        %827 = vmatpush1.bf16.msra.mxu0 %v811
        %828 = vmatprep.subr.bf16.mxu0 0
        %829 = vmatpush1.bf16.msra.mxu0 %v810
        %830 = vmatprep.subr.bf16.mxu0 0
        %831 = vmatpush1.bf16.msra.mxu0 %v809
        %832 = vmatprep.subr.bf16.mxu0 0
        %833 = vmatpush1.bf16.msra.mxu0 %v808
        %834 = vmatprep.subr.bf16.mxu0 0
        %835 = vmatpush1.bf16.msra.mxu0 %v807
        %836 = vmatprep.subr.bf16.mxu0 0
        %837 = vmatpush1.bf16.msra.mxu0 %v806
        %838 = vmatprep.subr.bf16.mxu0 0
        %839 = vmatpush2.bf16.msra.mxu0 0
        %840 = vmatprep.subr.bf16.mxu0 0
        %841 = vmatpush2.bf16.msra.mxu0 0
        %842 = vmatprep.subr.bf16.mxu0 0
        %843 = vmatpush2.bf16.msra.mxu0 0
        %844 = vmatprep.subr.bf16.mxu0 0
        %845 = vmatpush2.bf16.msra.mxu0 0
        %846 = vmatprep.subr.bf16.mxu0 0
        %847 = vmatpush2.bf16.msra.mxu0 0
        %848 = vmatprep.subr.bf16.mxu0 0
        %849 = vmatpush2.bf16.msra.mxu0 0
        %850 = vmatprep.subr.bf16.mxu0 0
        %851 = vmatpush2.bf16.msra.mxu0 0
        %852 = vmatprep.subr.bf16.mxu0 0
        %853 = vmatpush2.bf16.msra.mxu0 0
        %854 = vmatprep.mubr.bf16.mxu0 0
        %855 = vmatmul.mubr.bf16.gmra.mxu0 %v749
        %v856 = vpop.f32.mrf.mxu0
        %v857 = vadd.f32 %v772, %v856
        %v858 = vpop.f32.mrf.mxu0
        %v859 = vpop.f32.mrf.mxu0
        %v860 = vadd.f32 %v772, %v859
        %v861 = vpop.f32.mrf.mxu0
        %862 = vmatprep.mubr.bf16.mxu0 0
        %863 = vmatmul.mubr.bf16.gmra.mxu0 %v750
        %v864 = vpop.f32.mrf.mxu0
        %v865 = vadd.f32 %v772, %v864
        %v866 = vpop.f32.mrf.mxu0
        %v867 = vpop.f32.mrf.mxu0
        %v868 = vadd.f32 %v772, %v867
        %v869 = vpop.f32.mrf.mxu0
        %870 = vdwg.mxu0
        %871 = vst [vmem:[%s295] sm:$0xff] %v857
        %872 = vst [vmem:[%s295 + $0x8] sm:$0xff] %v860
        %873 = vst [vmem:[%s295 + $0x10] sm:$0xff] %v865
        %874 = vst [vmem:[%s295 + $0x18] sm:$0xff] %v868
        %s875 = smul.u32 4, %s19
        %p876 = scmp.lt.s32.totalorder %s875, 7
        %s877 = scalar_select %p876, %s875, 7
        %s878 = smul.addr %s877, 8
        %s879 = scalar_lea.vmem %s7, %s878
        // Predicated region
        $region53: #{mlp_skip_forward.1} parent=47 // pred_check
          %p880 = pneg %p189
        $region54: #{mlp_skip_forward.1} parent=47 // pred_check_branch
          %882 = sbr.rel (%p880) target = $region56
        $region55: #{mlp_skip_forward.1} parent=47 // pred_region
          %s883 = smul.u32 4, %s19
        $region56: #{mlp_skip_forward.1} parent=47 // pred_fallthru
          _
      $region48: #{mlp_skip_forward.1} parent=5 // pred_fallthru
        _
      %p884 = scmp.le.s32.totalorder 2, %s14
      // Predicated region
      $region57: #{mlp_skip_forward.1} parent=5 // pred_check
        %p885 = pneg %p884
      $region58: #{mlp_skip_forward.1} parent=5 // pred_check_branch
        %887 = sbr.rel (%p885) target = $region60
      $region59: #{mlp_skip_forward.1} parent=5 // pred_region
        %s888 = ssub.s32 %s14, 2
        // Predicated region
        $region61: #{mlp_skip_forward.1} parent=59 // pred_check
          %p889 = pneg %p195
        $region62: #{mlp_skip_forward.1} parent=59 // pred_check_branch
          %891 = sbr.rel (%p889) target = $region64
        $region63: #{mlp_skip_forward.1} parent=59 // pred_region
          %s892 = smul.u32 4, %s20
          %p893 = scmp.lt.s32.totalorder %s892, 7
          %s894 = scalar_select %p893, %s892, 7
          %s895 = smul.addr %s894, 8
          %s896 = scalar_lea.vmem %s7, %s895
        $region64: #{mlp_skip_forward.1} parent=59 // pred_fallthru
          _
      $region60: #{mlp_skip_forward.1} parent=5 // pred_fallthru
        _
    $region6: #{mlp_skip_forward.1} parent=1 // loop_footer
      %s18 = sadd.s32 1, %s14
    $region7: #{mlp_skip_forward.1} parent=1 // loop_footer_branch
      %13 = sbr.rel target = $region3
    $region8: #{mlp_skip_forward.1} parent=1 // loop_exit
      _
    %897 = vsyncpa [#allocation3], 1
    %s898 = scalar_lea.sflag [#allocation3], 1
    %899 = vsyncpa %s898, 1

</llo_original>
